<compile_context>
chip_gen: v5e
topology: v5e:2x2
jax: 0.10.0
libtpu: 0.0.40
codegen_flags: <defaults>
</compile_context>

<pallas_src>
import jax
import jax.numpy as jnp
from jax.experimental import pallas as pl
from jax.experimental.pallas import tpu as pltpu

INPUT_SIZE = 28 * 28   # 784
OUTPUT_SIZE = 10


def _flatten_passthrough_kernel(x_ref, o_ref):
    # Whole (B, 784) slab is one VMEM block; just pass it through.
    o_ref[...] = x_ref[...]


def neural_net_forward(x, params):
    """Reproduces NeuralNet.forward: two nn.Flatten calls (self.linear unused).

    x: (B, C, H, W) float32
    returns: (B, C*H*W) float32
    """
    del params  # self.linear is constructed but never applied in forward()
    B = x.shape[0]
    flat = x.reshape(B, -1)  # metadata-only view; presents a lane-dense 2-D slab

    # NOTE: the block covers the full array, so the (8,128) divisibility rule
    # does not apply (last dim 784 == full extent). Any future sub-blocking of
    # the lane dim must use multiples of 128 (784 = 6*128 + 16), and any
    # sub-blocking of B must use multiples of 8.
    out = pl.pallas_call(
        _flatten_passthrough_kernel,
        out_shape=jax.ShapeDtypeStruct(flat.shape, flat.dtype),
        in_specs=[pl.BlockSpec(memory_space=pltpu.MemorySpace.VMEM)],
        out_specs=pl.BlockSpec(memory_space=pltpu.MemorySpace.VMEM),
        input_output_aliases={0: 0},  # reuse input HBM buffer for the output
    )(flat)
    return out


def init_params(key):
    """Deterministic init of the (unused) nn.Linear(784, 10) parameters."""
    kw, kb = jax.random.split(key)
    bound = 1.0 / jnp.sqrt(INPUT_SIZE)
    w = jax.random.uniform(kw, (OUTPUT_SIZE, INPUT_SIZE), jnp.float32, -bound, bound)
    b = jax.random.uniform(kb, (OUTPUT_SIZE,), jnp.float32, -bound, bound)
    return {"linear_w": w, "linear_b": b}


if __name__ == "__main__":
    key = jax.random.PRNGKey(0)
    kx, kp = jax.random.split(key)

    B, C, H, W = 2, 1, 28, 28
    x = jax.random.normal(kx, (B, C, H, W), dtype=jnp.float32)
    params = init_params(kp)

    out = neural_net_forward(x, params)
    out = jax.block_until_ready(out)

    # Reference check against pure-JAX flatten semantics.
    ref = x.reshape(B, -1)
    assert out.shape == (B, C * H * W), out.shape
    assert out.dtype == x.dtype, out.dtype
    assert jnp.allclose(out, ref), "mismatch vs reference flatten"

    print("KERNEL_OK")
</pallas_src>

<mosaic_0001>
module attributes {stable_mosaic.version = 11 : i64} {
  func.func @_flatten_passthrough_kernel(%arg0: memref<2x784xf32, #tpu.memory_space<vmem>>, %arg1: memref<2x784xf32, #tpu.memory_space<vmem>>) attributes {dimension_semantics = [], scalar_prefetch = 0 : i64, scratch_operands = 0 : i64, tpu.core_type = #tpu.core_type<tc>} {
    %c0 = arith.constant 0 : index
    %c0_0 = arith.constant 0 : index
    %0 = vector.load %arg0[%c0, %c0_0] : memref<2x784xf32, #tpu.memory_space<vmem>>, vector<2x784xf32>
    %c0_1 = arith.constant 0 : index
    %c0_2 = arith.constant 0 : index
    %1 = vector.load %arg1[%c0_1, %c0_2] : memref<2x784xf32, #tpu.memory_space<vmem>>, vector<2x784xf32>
    tpu.vector_store %arg1[%c0_1, %c0_2], %0 {strides = array<i32>} : memref<2x784xf32, #tpu.memory_space<vmem>>, vector<2x784xf32>,
    return
  }
}

</mosaic_0001>

<llo_original>
// kernel: tpu_custom_call.1
$region0: #{tpu_custom_call.1}
  #allocation0 [shape = 'u32[]', space=smem, size = 0x4, offset = 0x4, fixed_abs, tag = 'smem constant byte address 0x4 - core index']
  #allocation1 [shape = 'u32[72,128]{1,0:T(1,128)}', space=vmem, size = 0x9000, scoped, tag = 'internal scratch']
  %s0 = inlined_call_operand.hbm [shape: f32[2,784], index: 0, kind: input, shape index: {}, may-alias: {0,1}]
  %s1 = inlined_call_operand.hbm [shape: f32[2,784], index: 1, kind: output, shape index: {}, may-alias: {0,1}]
  %s2 = sld [smem:[#allocation0]]
  $region18: #{tpu_custom_call.1} parent=0
    _
  %s4 = ssub.s32 1, %s2
  %s5 = scalar_select 0, %s4, %s2
  $region1: #{tpu_custom_call.1} parent=0
    #allocation2 [shape = 'u8[7168]{0}', space=vmem, size = 0x1c00, scoped, tag = 'input window, operand 0, single buffered']
    #allocation3 [shape = 's32[1]{0}', space=sflag, size = 0x4, scoped, tag = 'scoped memory for tpu_custom_call.1']
    #allocation4 [shape = 's32[1]{0}', space=sflag, size = 0x4, scoped, tag = 'scoped memory for tpu_custom_call.1']
    #allocation5 [shape = 'u8[7168]{0}', space=vmem, size = 0x1c00, scoped, tag = 'output window, operand 0, single buffered']
    %6 = vsyncpa [#allocation3], 0
    %7 = vsyncpa [#allocation4], 0
    // Predicated region
    $region2: #{tpu_custom_call.1} parent=1 // pred_check
      _
    $region3: #{tpu_custom_call.1} parent=1 // pred_check_branch
      %9 = sbr.rel (0) target = $region5
    $region4: #{tpu_custom_call.1} parent=1 // pred_region
      %11 = vsyncadd [#allocation3], 0
      %s13 = sshll.u32 %s0, 4
      %s14 = int_to_ptr.hbm [resolvable:$true] %s13
      %s15 = sshll.u32 [#allocation2], 4
      %s16 = int_to_ptr.vmem [resolvable:$true] %s15
      %18 = dma.hbm_to_vmem [thread:$0]  %s14, 224, %s16, [#allocation3]
    $region5: #{tpu_custom_call.1} parent=1 // pred_fallthru
      _
    // Predicated region
    $region6: #{tpu_custom_call.1} parent=1 // pred_check
      _
    $region7: #{tpu_custom_call.1} parent=1 // pred_check_branch
      %20 = sbr.rel (0) target = $region9
    $region8: #{tpu_custom_call.1} parent=1 // pred_region
      %22 = dma.done [#allocation3], 224
    $region9: #{tpu_custom_call.1} parent=1 // pred_fallthru
      _
    %v23 = vld [vmem:[#allocation2] sm:$0xff]
    %v24 = vld [vmem:[#allocation2 + $0x8] sm:$0x3f]
    %25 = vst [vmem:[#allocation5] sm:$0xff] %v23
    %vm26 = vcmask 1041408
    %vm27 = vcmask 1043458
    %vm28 = vmor %vm27, %vm26
    %vm29 = vcmask 128004
    %vm30 = vmor %vm29, %vm28
    %31 = vst.msk [vmem:[#allocation5 + $0x8] sm:$0x3f] %vm30, %v24
    // Predicated region
    $region10: #{tpu_custom_call.1} parent=1 // pred_check
      _
    $region11: #{tpu_custom_call.1} parent=1 // pred_check_branch
      %33 = sbr.rel (0) target = $region13
    $region12: #{tpu_custom_call.1} parent=1 // pred_region
      %35 = vsyncadd [#allocation4], 0
      %s37 = sshll.u32 [#allocation5], 4
      %s38 = int_to_ptr.vmem [resolvable:$true] %s37
      %s39 = sshll.u32 %s1, 4
      %s40 = int_to_ptr.hbm [resolvable:$true] %s39
      %42 = dma.vmem_to_hbm [thread:$0]  %s38, 224, %s40, [#allocation4]
    $region13: #{tpu_custom_call.1} parent=1 // pred_fallthru
      _
    // Predicated region
    $region14: #{tpu_custom_call.1} parent=1 // pred_check
      _
    $region15: #{tpu_custom_call.1} parent=1 // pred_check_branch
      %44 = sbr.rel (0) target = $region17
    $region16: #{tpu_custom_call.1} parent=1 // pred_region
      %46 = dma.done [#allocation4], 224
    $region17: #{tpu_custom_call.1} parent=1 // pred_fallthru
      _
    %47 = vsyncpa [#allocation3], 1
    %48 = vsyncpa [#allocation4], 1

</llo_original>
